<compile_context>
chip_gen: v5e
topology: v5e:2x2
jax: 0.10.0
libtpu: 0.0.40
codegen_flags: <defaults>
</compile_context>

<pallas_src>
import functools

import jax
import jax.numpy as jnp
from jax.experimental import pallas as pl
from jax.experimental.pallas import tpu as pltpu

_LANE = 128


def _snn_mlp_kernel(x_ref, w1_ref, t1_ref, w2_ref, t2_ref, o_ref):
    # Layer 1: Linear (bias folded into per-unit threshold) + IF spike (single step, v=0).
    h = jnp.dot(x_ref[...], w1_ref[...], preferred_element_type=jnp.float32)
    s1 = (h >= t1_ref[...]).astype(jnp.float32)          # 0/1 spikes, f32 (v5e-safe VPU)

    # Layer 2: Linear + IF spike.  Spikes are exact 0/1, so bf16 output is lossless.
    z = jnp.dot(s1, w2_ref[...], preferred_element_type=jnp.float32)
    o_ref[...] = (z >= t2_ref[...]).astype(o_ref.dtype)


def prepare_snn_mlp_params(w1, b1, w2, b2, threshold):
    """One-time host-side prep: fold biases into thresholds, pad to lane-dense shapes.

    Cache the returned tensors and reuse them for every forward call.
    """
    E, H = w1.shape
    C = w2.shape[1]
    Hp = pl.cdiv(H, _LANE) * _LANE
    Cp = pl.cdiv(C, _LANE) * _LANE

    w1p = jnp.pad(w1.astype(jnp.float32), ((0, 0), (0, Hp - H)))
    w2p = jnp.pad(w2.astype(jnp.float32), ((0, Hp - H), (0, Cp - C)))

    # Fold bias into threshold: (h + b >= thr) <=> (h >= thr - b).
    # Padded lanes get +inf so they can never spike.
    t1p = jnp.pad((threshold - b1).astype(jnp.float32).reshape(1, H),
                  ((0, 0), (0, Hp - H)), constant_values=jnp.inf)
    t2p = jnp.pad((threshold - b2).astype(jnp.float32).reshape(1, C),
                  ((0, 0), (0, Cp - C)), constant_values=jnp.inf)
    return w1p, t1p, w2p, t2p


def _batch_tiling(B, tb_max=2048):
    """Pick (tile_rows, padded_batch, n_steps) with minimal padding overshoot."""
    sub = 16 if B >= 16 else 8          # bf16 output packs 16 rows per vreg tile
    n = pl.cdiv(B, tb_max)
    # Prefer >=2 grid steps so the "parallel" batch axis can shard across both
    # TensorCores on v7x (no effect on v5e/v6e, which have a single TC).
    if n == 1 and B >= 2 * sub:
        n = 2
    tb = pl.cdiv(pl.cdiv(B, n), sub) * sub
    return tb, n * tb, n


@functools.partial(jax.jit, static_argnames=("num_classes",))
def snn_mlp_forward(x, w1p, t1p, w2p, t2p, *, num_classes):
    """x: [B, E] f32; w1p/t1p/w2p/t2p: outputs of prepare_snn_mlp_params."""
    B, E = x.shape
    Hp = w1p.shape[1]
    Cp = w2p.shape[1]

    TB, Bp, n_steps = _batch_tiling(B)

    x32 = x.astype(jnp.float32)
    if Bp != B:
        x32 = jnp.pad(x32, ((0, Bp - B), (0, 0)))   # fuses under jit with dispatch

    cost = pl.CostEstimate(
        flops=2 * Bp * E * Hp + 2 * Bp * Hp * Cp,
        transcendentals=0,
        bytes_accessed=(Bp * E * 4 + E * Hp * 4 + Hp * 4
                        + Hp * Cp * 4 + Cp * 4 + Bp * Cp * 2),
    )

    out_padded = pl.pallas_call(
        _snn_mlp_kernel,
        out_shape=jax.ShapeDtypeStruct((Bp, Cp), jnp.bfloat16),
        grid_spec=pltpu.PrefetchScalarGridSpec(
            num_scalar_prefetch=0,
            grid=(n_steps,),
            in_specs=[
                pl.BlockSpec((TB, E), lambda i: (i, 0)),    # x: tiled on batch
                pl.BlockSpec((E, Hp), lambda i: (0, 0)),    # w1: VMEM-resident
                pl.BlockSpec((1, Hp), lambda i: (0, 0)),    # thr1 (bias folded)
                pl.BlockSpec((Hp, Cp), lambda i: (0, 0)),   # w2: VMEM-resident
                pl.BlockSpec((1, Cp), lambda i: (0, 0)),    # thr2 (bias folded)
            ],
            out_specs=pl.BlockSpec((TB, Cp), lambda i: (i, 0)),
        ),
        compiler_params=pltpu.CompilerParams(
            dimension_semantics=("parallel",)),
        cost_estimate=cost,
    )(x32, w1p, t1p, w2p, t2p)

    # Slice away batch/class padding; spikes back to f32 for the consumer.
    return out_padded[:B, :num_classes].astype(jnp.float32)


def reference_forward(x, w1, b1, w2, b2, threshold):
    # Full-precision f32 forward matching the PyTorch module's single-step IF
    # semantics (v=0): spike = (x @ W + b >= threshold).
    h = jnp.dot(x, w1, precision=jax.lax.Precision.HIGHEST) + b1
    s1 = (h >= threshold).astype(jnp.float32)
    z = jnp.dot(s1, w2, precision=jax.lax.Precision.HIGHEST) + b2
    return (z >= threshold).astype(jnp.float32)


if __name__ == "__main__":
    # Module hyper-params (hidden_size_2 exists in __init__ but is unused in forward).
    num_classes = 16
    num_encoders = 32
    hidden_size = 64
    hidden_size_2 = 32           # unused by forward (kept for parity with __init__)
    threshold_value = 1.0
    bias_option = True
    reset_value_residual = True  # v_reset=None; no effect on a single-timestep forward

    batch = 8

    key = jax.random.PRNGKey(0)
    kx, kw1, kb1, kw2, kb2 = jax.random.split(key, 5)

    x = jax.random.normal(kx, (batch, num_encoders), dtype=jnp.float32)

    # Deterministic parameter init (nn.Linear-style uniform bounds).
    lim1 = 1.0 / jnp.sqrt(num_encoders)
    w1 = jax.random.uniform(kw1, (num_encoders, hidden_size), jnp.float32, -lim1, lim1)
    b1 = (jax.random.uniform(kb1, (1, hidden_size), jnp.float32, -lim1, lim1)
          if bias_option else jnp.zeros((1, hidden_size), jnp.float32))

    lim2 = 1.0 / jnp.sqrt(hidden_size)
    w2 = jax.random.uniform(kw2, (hidden_size, num_classes), jnp.float32, -lim2, lim2)
    b2 = (jax.random.uniform(kb2, (1, num_classes), jnp.float32, -lim2, lim2)
          if bias_option else jnp.zeros((1, num_classes), jnp.float32))

    # One-time parameter prep (cached; reused for every forward call).
    params = prepare_snn_mlp_params(w1, b1, w2, b2, threshold_value)
    params = jax.block_until_ready(params)

    out = snn_mlp_forward(x, *params, num_classes=num_classes)
    out = jax.block_until_ready(out)

    ref = reference_forward(x, w1, b1, w2, b2, threshold_value)
    assert out.shape == (batch, num_classes)
    assert jnp.array_equal(out, ref), "Pallas output mismatch vs reference"

    print("KERNEL_OK")
</pallas_src>

<mosaic_0001>
module attributes {stable_mosaic.version = 11 : i64} {
  func.func @_snn_mlp_kernel(%arg0: i32, %arg1: memref<8x32xf32, #tpu.memory_space<vmem>>, %arg2: memref<32x128xf32, #tpu.memory_space<vmem>>, %arg3: memref<1x128xf32, #tpu.memory_space<vmem>>, %arg4: memref<128x128xf32, #tpu.memory_space<vmem>>, %arg5: memref<1x128xf32, #tpu.memory_space<vmem>>, %arg6: memref<8x128xbf16, #tpu.memory_space<vmem>>) attributes {dimension_semantics = [#tpu.dimension_semantics<parallel>], iteration_bounds = array<i64: 1>, scalar_prefetch = 0 : i64, scratch_operands = 0 : i64, tpu.core_type = #tpu.core_type<tc>, window_params = [{transform_indices = @transform_0, window_bounds = array<i64: 8, 32>}, {pipeline_mode = #tpu.pipeline_mode<synchronous>, transform_indices = @transform_1, window_bounds = array<i64: 32, 128>}, {pipeline_mode = #tpu.pipeline_mode<synchronous>, transform_indices = @transform_2, window_bounds = array<i64: 1, 128>}, {pipeline_mode = #tpu.pipeline_mode<synchronous>, transform_indices = @transform_3, window_bounds = array<i64: 128, 128>}, {pipeline_mode = #tpu.pipeline_mode<synchronous>, transform_indices = @transform_4, window_bounds = array<i64: 1, 128>}, {transform_indices = @transform_5, window_bounds = array<i64: 8, 128>}]} {
    %c0 = arith.constant 0 : index
    %c0_0 = arith.constant 0 : index
    %0 = vector.load %arg1[%c0, %c0_0] : memref<8x32xf32, #tpu.memory_space<vmem>>, vector<8x32xf32>
    %c0_1 = arith.constant 0 : index
    %c0_2 = arith.constant 0 : index
    %1 = vector.load %arg2[%c0_1, %c0_2] : memref<32x128xf32, #tpu.memory_space<vmem>>, vector<32x128xf32>
    %cst = arith.constant dense<0.000000e+00> : vector<8x128xf32>
    %2 = tpu.matmul %0, %1, %cst {dimension_numbers = #tpu.dot_dimension_numbers<[1], [0], [0], [1], [0, 0, 1, 1], [], []>} : vector<8x32xf32>, vector<32x128xf32>, vector<8x128xf32> -> vector<8x128xf32>
    %c0_3 = arith.constant 0 : index
    %c0_4 = arith.constant 0 : index
    %3 = vector.load %arg3[%c0_3, %c0_4] : memref<1x128xf32, #tpu.memory_space<vmem>>, vector<1x128xf32>
    %4 = vector.broadcast %3 : vector<1x128xf32> to vector<8x128xf32>
    %5 = arith.cmpf oge, %2, %4 : vector<8x128xf32>
    %6 = arith.extui %5 : vector<8x128xi1> to vector<8x128xi32>
    %7 = arith.sitofp %6 : vector<8x128xi32> to vector<8x128xf32>
    %c0_5 = arith.constant 0 : index
    %c0_6 = arith.constant 0 : index
    %8 = vector.load %arg4[%c0_5, %c0_6] : memref<128x128xf32, #tpu.memory_space<vmem>>, vector<128x128xf32>
    %cst_7 = arith.constant dense<0.000000e+00> : vector<8x128xf32>
    %9 = tpu.matmul %7, %8, %cst_7 {dimension_numbers = #tpu.dot_dimension_numbers<[1], [0], [0], [1], [0, 0, 1, 1], [], []>} : vector<8x128xf32>, vector<128x128xf32>, vector<8x128xf32> -> vector<8x128xf32>
    %c0_8 = arith.constant 0 : index
    %c0_9 = arith.constant 0 : index
    %10 = vector.load %arg5[%c0_8, %c0_9] : memref<1x128xf32, #tpu.memory_space<vmem>>, vector<1x128xf32>
    %11 = vector.broadcast %10 : vector<1x128xf32> to vector<8x128xf32>
    %12 = arith.cmpf oge, %9, %11 : vector<8x128xf32>
    %13 = arith.extui %12 : vector<8x128xi1> to vector<8x128xi32>
    %14 = arith.sitofp %13 : vector<8x128xi32> to vector<8x128xf32>
    %15 = arith.truncf %14 : vector<8x128xf32> to vector<8x128xbf16>
    %c0_10 = arith.constant 0 : index
    %c0_11 = arith.constant 0 : index
    %16 = vector.load %arg6[%c0_10, %c0_11] : memref<8x128xbf16, #tpu.memory_space<vmem>>, vector<8x128xbf16>
    tpu.vector_store %arg6[%c0_10, %c0_11], %15 {strides = array<i32>} : memref<8x128xbf16, #tpu.memory_space<vmem>>, vector<8x128xbf16>,
    return
  }
  func.func @transform_0(%arg0: i32) -> (i32, i32) {
    %c0_i32 = arith.constant 0 : i32
    %c0_i32_0 = arith.constant 0 : i32
    return %arg0, %c0_i32 : i32, i32
  }
  func.func @transform_1(%arg0: i32) -> (i32, i32) {
    %c0_i32 = arith.constant 0 : i32
    %c0_i32_0 = arith.constant 0 : i32
    %c0_i32_1 = arith.constant 0 : i32
    return %c0_i32, %c0_i32_0 : i32, i32
  }
  func.func @transform_2(%arg0: i32) -> (i32, i32) {
    %c0_i32 = arith.constant 0 : i32
    %c0_i32_0 = arith.constant 0 : i32
    %c0_i32_1 = arith.constant 0 : i32
    return %c0_i32, %c0_i32_0 : i32, i32
  }
  func.func @transform_3(%arg0: i32) -> (i32, i32) {
    %c0_i32 = arith.constant 0 : i32
    %c0_i32_0 = arith.constant 0 : i32
    %c0_i32_1 = arith.constant 0 : i32
    return %c0_i32, %c0_i32_0 : i32, i32
  }
  func.func @transform_4(%arg0: i32) -> (i32, i32) {
    %c0_i32 = arith.constant 0 : i32
    %c0_i32_0 = arith.constant 0 : i32
    %c0_i32_1 = arith.constant 0 : i32
    return %c0_i32, %c0_i32_0 : i32, i32
  }
  func.func @transform_5(%arg0: i32) -> (i32, i32) {
    %c0_i32 = arith.constant 0 : i32
    %c0_i32_0 = arith.constant 0 : i32
    return %arg0, %c0_i32 : i32, i32
  }
}

</mosaic_0001>

<llo_original>
// kernel: snn_mlp_forward.1
$region0: #{snn_mlp_forward.1}
  #allocation0 [shape = 'u32[]', space=smem, size = 0x4, offset = 0x4, fixed_abs, tag = 'smem constant byte address 0x4 - core index']
  #allocation1 [shape = 'u32[72,128]{1,0:T(1,128)}', space=vmem, size = 0x9000, scoped, tag = 'internal scratch']
  %s0 = inlined_call_operand.hbm [shape: f32[8,32], index: 0, kind: input, shape index: {}]
  %s1 = inlined_call_operand.hbm [shape: f32[32,128], index: 1, kind: input, shape index: {}]
  %s2 = inlined_call_operand.vmem [shape: f32[1,128], index: 2, kind: input, shape index: {}]
  %s3 = inlined_call_operand.hbm [shape: f32[128,128], index: 3, kind: input, shape index: {}]
  %s4 = inlined_call_operand.vmem [shape: f32[1,128], index: 4, kind: input, shape index: {}]
  %s5 = inlined_call_operand.vmem [shape: bf16[8,128], index: 5, kind: output, shape index: {}]
  %s6 = sld [smem:[#allocation0]]
  $region42: #{snn_mlp_forward.1} parent=0
    _
  %s8 = ssub.s32 1, %s6
  %s9 = scalar_select 0, %s8, %s6
  $region1: #{snn_mlp_forward.1} parent=0
    #allocation2 [shape = 'u8[4096]{0}', space=vmem, size = 0x1000, scoped, tag = 'input window, operand 0, single buffered']
    #allocation3 [shape = 's32[1]{0}', space=sflag, size = 0x4, scoped, tag = 'scoped memory for snn_mlp_forward.1']
    #allocation4 [shape = 'u8[16384]{0}', space=vmem, size = 0x4000, scoped, tag = 'input window, operand 1, single buffered']
    #allocation5 [shape = 's32[1]{0}', space=sflag, size = 0x4, scoped, tag = 'scoped memory for snn_mlp_forward.1']
    #allocation6 [shape = 'u8[65536]{0}', space=vmem, size = 0x10000, scoped, tag = 'input window, operand 3, single buffered']
    %10 = vsyncpa [#allocation3], 0
    %11 = vsyncpa [#allocation5], 0
    // Predicated region
    $region2: #{snn_mlp_forward.1} parent=1 // pred_check
      _
    $region3: #{snn_mlp_forward.1} parent=1 // pred_check_branch
      %13 = sbr.rel (0) target = $region5
    $region4: #{snn_mlp_forward.1} parent=1 // pred_region
      %15 = vsyncadd [#allocation3], 0
      %s17 = sshll.u32 %s0, 4
      %s18 = int_to_ptr.hbm [resolvable:$true] %s17
      %s19 = sshll.u32 [#allocation2], 4
      %s20 = int_to_ptr.vmem [resolvable:$true] %s19
      %22 = dma.hbm_to_vmem [thread:$0]  %s18, 128, %s20, [#allocation3]
    $region5: #{snn_mlp_forward.1} parent=1 // pred_fallthru
      _
    // Predicated region
    $region6: #{snn_mlp_forward.1} parent=1 // pred_check
      _
    $region7: #{snn_mlp_forward.1} parent=1 // pred_check_branch
      %24 = sbr.rel (0) target = $region9
    $region8: #{snn_mlp_forward.1} parent=1 // pred_region
      %26 = vsyncadd [#allocation5], 0
      %s27 = sshll.u32 %s1, 4
      %s28 = int_to_ptr.hbm [resolvable:$true] %s27
      %s29 = sshll.u32 [#allocation4], 4
      %s30 = int_to_ptr.vmem [resolvable:$true] %s29
      %35 = dma.hbm_to_vmem [thread:$0]  %s28, 512, %s30, [#allocation5], 128, 128, 8
    $region9: #{snn_mlp_forward.1} parent=1 // pred_fallthru
      _
    // Predicated region
    $region10: #{snn_mlp_forward.1} parent=1 // pred_check
      _
    $region11: #{snn_mlp_forward.1} parent=1 // pred_check_branch
      %37 = sbr.rel (0) target = $region13
    $region12: #{snn_mlp_forward.1} parent=1 // pred_region
      _
    $region13: #{snn_mlp_forward.1} parent=1 // pred_fallthru
      _
    // Predicated region
    $region14: #{snn_mlp_forward.1} parent=1 // pred_check
      _
    $region15: #{snn_mlp_forward.1} parent=1 // pred_check_branch
      %39 = sbr.rel (0) target = $region17
    $region16: #{snn_mlp_forward.1} parent=1 // pred_region
      %41 = vsyncadd [#allocation5], 0
      %s42 = sshll.u32 %s3, 4
      %s43 = int_to_ptr.hbm [resolvable:$true] %s42
      %s44 = sshll.u32 [#allocation6], 4
      %s45 = int_to_ptr.vmem [resolvable:$true] %s44
      %50 = dma.hbm_to_vmem [thread:$0]  %s43, 2048, %s45, [#allocation5], 128, 128, 8
    $region17: #{snn_mlp_forward.1} parent=1 // pred_fallthru
      _
    // Predicated region
    $region18: #{snn_mlp_forward.1} parent=1 // pred_check
      _
    $region19: #{snn_mlp_forward.1} parent=1 // pred_check_branch
      %52 = sbr.rel (0) target = $region21
    $region20: #{snn_mlp_forward.1} parent=1 // pred_region
      _
    $region21: #{snn_mlp_forward.1} parent=1 // pred_fallthru
      _
    // Predicated region
    $region22: #{snn_mlp_forward.1} parent=1 // pred_check
      _
    $region23: #{snn_mlp_forward.1} parent=1 // pred_check_branch
      %54 = sbr.rel (0) target = $region25
    $region24: #{snn_mlp_forward.1} parent=1 // pred_region
      %56 = dma.done [#allocation3], 128
    $region25: #{snn_mlp_forward.1} parent=1 // pred_fallthru
      _
    // Predicated region
    $region26: #{snn_mlp_forward.1} parent=1 // pred_check
      _
    $region27: #{snn_mlp_forward.1} parent=1 // pred_check_branch
      %58 = sbr.rel (0) target = $region29
    $region28: #{snn_mlp_forward.1} parent=1 // pred_region
      %60 = dma.done [#allocation5], 512
    $region29: #{snn_mlp_forward.1} parent=1 // pred_fallthru
      _
    // Predicated region
    $region30: #{snn_mlp_forward.1} parent=1 // pred_check
      _
    $region31: #{snn_mlp_forward.1} parent=1 // pred_check_branch
      %62 = sbr.rel (0) target = $region33
    $region32: #{snn_mlp_forward.1} parent=1 // pred_region
      %64 = dma.done [#allocation5], 2048
    $region33: #{snn_mlp_forward.1} parent=1 // pred_fallthru
      _
    %v65 = vld [vmem:[#allocation2] sm:$0xff]
    %v66 = vld [vmem:[#allocation4] sm:$0xff]
    %v67 = vld [vmem:[#allocation4 + $0x8] sm:$0xff]
    %v68 = vld [vmem:[#allocation4 + $0x10] sm:$0xff]
    %v69 = vld [vmem:[#allocation4 + $0x18] sm:$0xff]
    %vm70 = vcmask 261120
    %v72 = vsel %vm70, %v65, 0
    %74 = vmatpush.msra.mxu0 0.0
    %75 = vmatpush.msra.mxu0 0.0
    %76 = vmatpush.msra.mxu0 0.0
    %77 = vmatpush.msra.mxu0 0.0
    %78 = vmatpush.msra.mxu0 0.0
    %79 = vmatpush.msra.mxu0 0.0
    %80 = vmatpush.msra.mxu0 0.0
    %81 = vmatpush.msra.mxu0 0.0
    %82 = vmatpush.msra.mxu0 0.0
    %83 = vmatpush.msra.mxu0 0.0
    %84 = vmatpush.msra.mxu0 0.0
    %85 = vmatpush.msra.mxu0 0.0
    %86 = vmatpush.msra.mxu0 %v69
    %87 = vmatpush.msra.mxu0 %v68
    %88 = vmatpush.msra.mxu0 %v67
    %89 = vmatpush.msra.mxu0 %v66
    %90 = vmatmul.f32.gmra.mxu0 %v72
    %v91 = vpop.f32.mrf.mxu0
    %v92 = vadd.f32 0.0, %v91
    %93 = vdwg.mxu0
    %v94 = vld [vmem:[%s2] sm:$0x1]
    %v96 = vperm.slane %v94, 0
    %vm98 = vcmp.ge.f32.partialorder %v92, %v96
    %v99 = vsel %vm98, 1, 0
    %v100 = vcvt.s32.f32 %v99
    %v101 = vld [vmem:[#allocation6] sm:$0xff]
    %v102 = vld [vmem:[#allocation6 + $0x8] sm:$0xff]
    %v103 = vld [vmem:[#allocation6 + $0x10] sm:$0xff]
    %v104 = vld [vmem:[#allocation6 + $0x18] sm:$0xff]
    %v105 = vld [vmem:[#allocation6 + $0x20] sm:$0xff]
    %v106 = vld [vmem:[#allocation6 + $0x28] sm:$0xff]
    %v107 = vld [vmem:[#allocation6 + $0x30] sm:$0xff]
    %v108 = vld [vmem:[#allocation6 + $0x38] sm:$0xff]
    %v109 = vld [vmem:[#allocation6 + $0x40] sm:$0xff]
    %v110 = vld [vmem:[#allocation6 + $0x48] sm:$0xff]
    %v111 = vld [vmem:[#allocation6 + $0x50] sm:$0xff]
    %v112 = vld [vmem:[#allocation6 + $0x58] sm:$0xff]
    %v113 = vld [vmem:[#allocation6 + $0x60] sm:$0xff]
    %v114 = vld [vmem:[#allocation6 + $0x68] sm:$0xff]
    %v115 = vld [vmem:[#allocation6 + $0x70] sm:$0xff]
    %v116 = vld [vmem:[#allocation6 + $0x78] sm:$0xff]
    %117 = vmatpush.msra.mxu0 %v116
    %118 = vmatpush.msra.mxu0 %v115
    %119 = vmatpush.msra.mxu0 %v114
    %120 = vmatpush.msra.mxu0 %v113
    %121 = vmatpush.msra.mxu0 %v112
    %122 = vmatpush.msra.mxu0 %v111
    %123 = vmatpush.msra.mxu0 %v110
    %124 = vmatpush.msra.mxu0 %v109
    %125 = vmatpush.msra.mxu0 %v108
    %126 = vmatpush.msra.mxu0 %v107
    %127 = vmatpush.msra.mxu0 %v106
    %128 = vmatpush.msra.mxu0 %v105
    %129 = vmatpush.msra.mxu0 %v104
    %130 = vmatpush.msra.mxu0 %v103
    %131 = vmatpush.msra.mxu0 %v102
    %132 = vmatpush.msra.mxu0 %v101
    %133 = vmatmul.f32.gmra.mxu0 %v100
    %v134 = vpop.f32.mrf.mxu0
    %v135 = vadd.f32 0.0, %v134
    %136 = vdwg.mxu0
    %v137 = vld [vmem:[%s4] sm:$0x1]
    %v139 = vperm.slane %v137, 0
    %vm141 = vcmp.ge.f32.partialorder %v135, %v139
    %v142 = vsel %vm141, 1, 0
    %v143 = vcvt.s32.f32 %v142
    %v144 = vpack.c.bf16 %v143, %v143
    %145 = vst [vmem:[%s5] sm:$0xf] %v144
    // Predicated region
    $region34: #{snn_mlp_forward.1} parent=1 // pred_check
      _
    $region35: #{snn_mlp_forward.1} parent=1 // pred_check_branch
      %147 = sbr.rel (0) target = $region37
    $region36: #{snn_mlp_forward.1} parent=1 // pred_region
      _
    $region37: #{snn_mlp_forward.1} parent=1 // pred_fallthru
      _
    // Predicated region
    $region38: #{snn_mlp_forward.1} parent=1 // pred_check
      _
    $region39: #{snn_mlp_forward.1} parent=1 // pred_check_branch
      %149 = sbr.rel (0) target = $region41
    $region40: #{snn_mlp_forward.1} parent=1 // pred_region
      _
    $region41: #{snn_mlp_forward.1} parent=1 // pred_fallthru
      _
    %150 = vsyncpa [#allocation3], 1
    %151 = vsyncpa [#allocation5], 1

</llo_original>
